<compile_context>
chip_gen: v5e
topology: v5e:2x2
jax: 0.10.0
libtpu: 0.0.40
codegen_flags: <defaults>
</compile_context>

<pallas_src>
import jax
import jax.numpy as jnp
from jax.experimental import pallas as pl
from jax.experimental.pallas import tpu as pltpu

HIDDEN = 16  # fixed by the PyTorch module (self.hidden = 16)


def _round_up(n, m):
    return ((n + m - 1) // m) * m


def _lrl_kernel(x_ref, w1_ref, b1_ref, w2_ref, b2_ref, o_ref):
    # First linear: [tb, in_dim] @ [in_dim, hidden] -> [tb, hidden] on the MXU,
    # f32 accumulation.  Bias [1, hidden] broadcasts over rows.
    h = jnp.dot(x_ref[...], w1_ref[...], preferred_element_type=jnp.float32)
    h = jnp.maximum(h + b1_ref[...], 0.0)
    # Second linear: [tb, hidden] @ [hidden, out_dim] -> [tb, out_dim].
    y = jnp.dot(h, w2_ref[...], preferred_element_type=jnp.float32)
    o_ref[...] = (y + b2_ref[...]).astype(o_ref.dtype)


def lrl_forward(x, w1, b1, w2, b2, *, block_batch=16384, xla_fallback_below=0):
    """Fused Linear -> ReLU -> Linear.

    x:  [B, in_dim] float32
    w1: [in_dim, HIDDEN], b1: [HIDDEN]
    w2: [HIDDEN, out_dim], b2: [out_dim]
    returns [B, out_dim] float32
    """
    B, in_dim = x.shape
    hidden = w1.shape[1]
    out_dim = w2.shape[1]

    # Optional tiny-batch bypass: at a handful of rows the kernel launch
    # dominates; plain XLA fusion is cheaper.  Disabled by default so the
    # Pallas path is always exercised.
    if B < xla_fallback_below:
        return jnp.maximum(x @ w1 + b1, 0.0) @ w2 + b2

    assert block_batch % 128 == 0, "block_batch must be a multiple of 128"

    # Clamp the tile:
    #   * never larger than needed (avoids a 64x blowup at B=8),
    #   * at most ~B/2 (rounded to 128) so the "parallel" grid axis has >= 2
    #     steps for v7x's two TensorCores whenever B > 128.
    bb = min(block_batch, max(128, _round_up(-(-B // 2), 128)))
    n_tiles = pl.cdiv(B, bb)

    b1r = b1.reshape(1, hidden)
    b2r = b2.reshape(1, out_dim)

    out = pl.pallas_call(
        _lrl_kernel,
        out_shape=jax.ShapeDtypeStruct((B, out_dim), x.dtype),
        grid_spec=pl.GridSpec(
            grid=(n_tiles,),
            in_specs=[
                # x tile: contiguous natural-layout slab, default double-buffered.
                pl.BlockSpec((bb, in_dim), lambda i: (i, 0)),
                # Weights / biases: constant index_map -> resident, fetched once.
                pl.BlockSpec((in_dim, hidden), lambda i: (0, 0)),
                pl.BlockSpec((1, hidden), lambda i: (0, 0)),
                pl.BlockSpec((hidden, out_dim), lambda i: (0, 0)),
                pl.BlockSpec((1, out_dim), lambda i: (0, 0)),
            ],
            out_specs=pl.BlockSpec((bb, out_dim), lambda i: (i, 0)),
        ),
        compiler_params=pltpu.CompilerParams(
            # Megacore sharding on v7x; ~5-6 MB of buffers at bb=16384 fits every
            # generation, 32 MiB scoped gives headroom without exceeding v7x VMEM.
            dimension_semantics=("parallel",),
            vmem_limit_bytes=32 * 1024 * 1024,
        ),
    )(x, w1, b1r, w2, b2r)

    return out


def _reference(x, w1, b1, w2, b2):
    h = jnp.maximum(x @ w1 + b1, 0.0)
    return h @ w2 + b2


if __name__ == "__main__":
    # Small shapes consistent with the module: LRL(in_dim=32, out_dim=8), batch=8.
    batch, in_dim, out_dim = 8, 32, 8

    key = jax.random.PRNGKey(0)
    kx, kw1, kb1, kw2, kb2 = jax.random.split(key, 5)

    x = jax.random.normal(kx, (batch, in_dim), dtype=jnp.float32)

    # Deterministic parameter init (PyTorch nn.Linear-style uniform bounds).
    bound1 = 1.0 / jnp.sqrt(in_dim)
    w1 = jax.random.uniform(kw1, (in_dim, HIDDEN), jnp.float32, -bound1, bound1)
    b1 = jax.random.uniform(kb1, (HIDDEN,), jnp.float32, -bound1, bound1)

    bound2 = 1.0 / jnp.sqrt(HIDDEN)
    w2 = jax.random.uniform(kw2, (HIDDEN, out_dim), jnp.float32, -bound2, bound2)
    b2 = jax.random.uniform(kb2, (out_dim,), jnp.float32, -bound2, bound2)

    out = jax.block_until_ready(lrl_forward(x, w1, b1, w2, b2))
    ref = _reference(x, w1, b1, w2, b2)
    assert out.shape == (batch, out_dim)
    assert jnp.allclose(out, ref, atol=1e-5, rtol=1e-5)

    # Second check: ragged batch with a small tile -> exercises the multi-step
    # pipelined grid and the masked last block (no explicit padding anywhere).
    xb = jax.random.normal(kx, (1000, in_dim), dtype=jnp.float32)
    outb = jax.block_until_ready(lrl_forward(xb, w1, b1, w2, b2, block_batch=256))
    refb = _reference(xb, w1, b1, w2, b2)
    assert outb.shape == (1000, out_dim)
    assert jnp.allclose(outb, refb, atol=1e-5, rtol=1e-5)

    print("KERNEL_OK")
</pallas_src>

<mosaic_0001>
module attributes {stable_mosaic.version = 11 : i64} {
  func.func @_lrl_kernel(%arg0: i32, %arg1: memref<128x32xf32, #tpu.memory_space<vmem>>, %arg2: memref<32x16xf32, #tpu.memory_space<vmem>>, %arg3: memref<1x16xf32, #tpu.memory_space<vmem>>, %arg4: memref<16x8xf32, #tpu.memory_space<vmem>>, %arg5: memref<1x8xf32, #tpu.memory_space<vmem>>, %arg6: memref<128x8xf32, #tpu.memory_space<vmem>>) attributes {dimension_semantics = [#tpu.dimension_semantics<parallel>], iteration_bounds = array<i64: 1>, scalar_prefetch = 0 : i64, scratch_operands = 0 : i64, tpu.core_type = #tpu.core_type<tc>, window_params = [{transform_indices = @transform_0, window_bounds = array<i64: 128, 32>}, {pipeline_mode = #tpu.pipeline_mode<synchronous>, transform_indices = @transform_1, window_bounds = array<i64: 32, 16>}, {pipeline_mode = #tpu.pipeline_mode<synchronous>, transform_indices = @transform_2, window_bounds = array<i64: 1, 16>}, {pipeline_mode = #tpu.pipeline_mode<synchronous>, transform_indices = @transform_3, window_bounds = array<i64: 16, 8>}, {pipeline_mode = #tpu.pipeline_mode<synchronous>, transform_indices = @transform_4, window_bounds = array<i64: 1, 8>}, {transform_indices = @transform_5, window_bounds = array<i64: 128, 8>}]} {
    %c0 = arith.constant 0 : index
    %c0_0 = arith.constant 0 : index
    %0 = vector.load %arg1[%c0, %c0_0] : memref<128x32xf32, #tpu.memory_space<vmem>>, vector<128x32xf32>
    %c0_1 = arith.constant 0 : index
    %c0_2 = arith.constant 0 : index
    %1 = vector.load %arg2[%c0_1, %c0_2] : memref<32x16xf32, #tpu.memory_space<vmem>>, vector<32x16xf32>
    %cst = arith.constant dense<0.000000e+00> : vector<128x16xf32>
    %2 = tpu.matmul %0, %1, %cst {dimension_numbers = #tpu.dot_dimension_numbers<[1], [0], [0], [1], [0, 0, 1, 1], [], []>} : vector<128x32xf32>, vector<32x16xf32>, vector<128x16xf32> -> vector<128x16xf32>
    %c0_3 = arith.constant 0 : index
    %c0_4 = arith.constant 0 : index
    %3 = vector.load %arg3[%c0_3, %c0_4] : memref<1x16xf32, #tpu.memory_space<vmem>>, vector<1x16xf32>
    %4 = vector.broadcast %3 : vector<1x16xf32> to vector<128x16xf32>
    %5 = arith.addf %2, %4 : vector<128x16xf32>
    %cst_5 = arith.constant 0.000000e+00 : f32
    %6 = vector.broadcast %cst_5 : f32 to vector<128x16xf32>
    %7 = arith.maximumf %5, %6 : vector<128x16xf32>
    %c0_6 = arith.constant 0 : index
    %c0_7 = arith.constant 0 : index
    %8 = vector.load %arg4[%c0_6, %c0_7] : memref<16x8xf32, #tpu.memory_space<vmem>>, vector<16x8xf32>
    %cst_8 = arith.constant dense<0.000000e+00> : vector<128x8xf32>
    %9 = tpu.matmul %7, %8, %cst_8 {dimension_numbers = #tpu.dot_dimension_numbers<[1], [0], [0], [1], [0, 0, 1, 1], [], []>} : vector<128x16xf32>, vector<16x8xf32>, vector<128x8xf32> -> vector<128x8xf32>
    %c0_9 = arith.constant 0 : index
    %c0_10 = arith.constant 0 : index
    %10 = vector.load %arg5[%c0_9, %c0_10] : memref<1x8xf32, #tpu.memory_space<vmem>>, vector<1x8xf32>
    %11 = vector.broadcast %10 : vector<1x8xf32> to vector<128x8xf32>
    %12 = arith.addf %9, %11 : vector<128x8xf32>
    %c0_11 = arith.constant 0 : index
    %c0_12 = arith.constant 0 : index
    %13 = vector.load %arg6[%c0_11, %c0_12] : memref<128x8xf32, #tpu.memory_space<vmem>>, vector<128x8xf32>
    tpu.vector_store %arg6[%c0_11, %c0_12], %12 {strides = array<i32>} : memref<128x8xf32, #tpu.memory_space<vmem>>, vector<128x8xf32>,
    return
  }
  func.func @transform_0(%arg0: i32) -> (i32, i32) {
    %c0_i32 = arith.constant 0 : i32
    %c0_i32_0 = arith.constant 0 : i32
    return %arg0, %c0_i32 : i32, i32
  }
  func.func @transform_1(%arg0: i32) -> (i32, i32) {
    %c0_i32 = arith.constant 0 : i32
    %c0_i32_0 = arith.constant 0 : i32
    %c0_i32_1 = arith.constant 0 : i32
    return %c0_i32, %c0_i32_0 : i32, i32
  }
  func.func @transform_2(%arg0: i32) -> (i32, i32) {
    %c0_i32 = arith.constant 0 : i32
    %c0_i32_0 = arith.constant 0 : i32
    %c0_i32_1 = arith.constant 0 : i32
    return %c0_i32, %c0_i32_0 : i32, i32
  }
  func.func @transform_3(%arg0: i32) -> (i32, i32) {
    %c0_i32 = arith.constant 0 : i32
    %c0_i32_0 = arith.constant 0 : i32
    %c0_i32_1 = arith.constant 0 : i32
    return %c0_i32, %c0_i32_0 : i32, i32
  }
  func.func @transform_4(%arg0: i32) -> (i32, i32) {
    %c0_i32 = arith.constant 0 : i32
    %c0_i32_0 = arith.constant 0 : i32
    %c0_i32_1 = arith.constant 0 : i32
    return %c0_i32, %c0_i32_0 : i32, i32
  }
  func.func @transform_5(%arg0: i32) -> (i32, i32) {
    %c0_i32 = arith.constant 0 : i32
    %c0_i32_0 = arith.constant 0 : i32
    return %arg0, %c0_i32 : i32, i32
  }
}

</mosaic_0001>

<llo_original>
// kernel: tpu_custom_call.1
$region0: #{tpu_custom_call.1}
  #allocation0 [shape = 'u32[]', space=smem, size = 0x4, offset = 0x4, fixed_abs, tag = 'smem constant byte address 0x4 - core index']
  #allocation1 [shape = 'u32[72,128]{1,0:T(1,128)}', space=vmem, size = 0x9000, scoped, tag = 'internal scratch']
  %s0 = inlined_call_operand.vmem [shape: f32[8,32], index: 0, kind: input, shape index: {}]
  %s1 = inlined_call_operand.vmem [shape: f32[32,16], index: 1, kind: input, shape index: {}]
  %s2 = inlined_call_operand.vmem [shape: f32[1,16], index: 2, kind: input, shape index: {}]
  %s3 = inlined_call_operand.vmem [shape: f32[16,8], index: 3, kind: input, shape index: {}]
  %s4 = inlined_call_operand.vmem [shape: f32[1,8], index: 4, kind: input, shape index: {}]
  %s5 = inlined_call_operand.hbm [shape: f32[8,8], index: 5, kind: output, shape index: {}]
  %s6 = sld [smem:[#allocation0]]
  $region30: #{tpu_custom_call.1} parent=0
    _
  %s8 = ssub.s32 1, %s6
  %s9 = scalar_select 0, %s8, %s6
  $region1: #{tpu_custom_call.1} parent=0
    #allocation2 [shape = 'u8[65536]{0}', space=vmem, size = 0x10000, scoped, tag = 'output window, operand 0, single buffered']
    #allocation3 [shape = 's32[1]{0}', space=sflag, size = 0x4, scoped, tag = 'scoped memory for tpu_custom_call.1']
    %10 = vsyncpa [#allocation3], 0
    // Predicated region
    $region2: #{tpu_custom_call.1} parent=1 // pred_check
      _
    $region3: #{tpu_custom_call.1} parent=1 // pred_check_branch
      %12 = sbr.rel (0) target = $region5
    $region4: #{tpu_custom_call.1} parent=1 // pred_region
      _
    $region5: #{tpu_custom_call.1} parent=1 // pred_fallthru
      _
    // Predicated region
    $region6: #{tpu_custom_call.1} parent=1 // pred_check
      _
    $region7: #{tpu_custom_call.1} parent=1 // pred_check_branch
      %14 = sbr.rel (0) target = $region9
    $region8: #{tpu_custom_call.1} parent=1 // pred_region
      _
    $region9: #{tpu_custom_call.1} parent=1 // pred_fallthru
      _
    // Predicated region
    $region10: #{tpu_custom_call.1} parent=1 // pred_check
      _
    $region11: #{tpu_custom_call.1} parent=1 // pred_check_branch
      %16 = sbr.rel (0) target = $region13
    $region12: #{tpu_custom_call.1} parent=1 // pred_region
      _
    $region13: #{tpu_custom_call.1} parent=1 // pred_fallthru
      _
    // Predicated region
    $region14: #{tpu_custom_call.1} parent=1 // pred_check
      _
    $region15: #{tpu_custom_call.1} parent=1 // pred_check_branch
      %18 = sbr.rel (0) target = $region17
    $region16: #{tpu_custom_call.1} parent=1 // pred_region
      _
    $region17: #{tpu_custom_call.1} parent=1 // pred_fallthru
      _
    // Predicated region
    $region18: #{tpu_custom_call.1} parent=1 // pred_check
      _
    $region19: #{tpu_custom_call.1} parent=1 // pred_check_branch
      %20 = sbr.rel (0) target = $region21
    $region20: #{tpu_custom_call.1} parent=1 // pred_region
      _
    $region21: #{tpu_custom_call.1} parent=1 // pred_fallthru
      _
    %v21 = vld [vmem:[%s0] sm:$0xff]
    %v22 = vld [vmem:[%s0 + $0x8] sm:$0xff]
    %v23 = vld [vmem:[%s0 + $0x10] sm:$0xff]
    %v24 = vld [vmem:[%s0 + $0x18] sm:$0xff]
    %v25 = vld [vmem:[%s0 + $0x20] sm:$0xff]
    %v26 = vld [vmem:[%s0 + $0x28] sm:$0xff]
    %v27 = vld [vmem:[%s0 + $0x30] sm:$0xff]
    %v28 = vld [vmem:[%s0 + $0x38] sm:$0xff]
    %v29 = vld [vmem:[%s0 + $0x40] sm:$0xff]
    %v30 = vld [vmem:[%s0 + $0x48] sm:$0xff]
    %v31 = vld [vmem:[%s0 + $0x50] sm:$0xff]
    %v32 = vld [vmem:[%s0 + $0x58] sm:$0xff]
    %v33 = vld [vmem:[%s0 + $0x60] sm:$0xff]
    %v34 = vld [vmem:[%s0 + $0x68] sm:$0xff]
    %v35 = vld [vmem:[%s0 + $0x70] sm:$0xff]
    %v36 = vld [vmem:[%s0 + $0x78] sm:$0xff]
    %v37 = vld [vmem:[%s1] sm:$0xff]
    %v38 = vld [vmem:[%s1 + $0x8] sm:$0xff]
    %v39 = vld [vmem:[%s1 + $0x10] sm:$0xff]
    %v40 = vld [vmem:[%s1 + $0x18] sm:$0xff]
    %v41 = vld [vmem:[%s2] sm:$0x1]
    %v43 = vperm.slane %v41, 0
    %vm45 = vcmask 261120
    %v47 = vsel %vm45, %v21, 0
    %v50 = vsel %vm45, %v22, 0
    %v53 = vsel %vm45, %v23, 0
    %v56 = vsel %vm45, %v24, 0
    %v59 = vsel %vm45, %v25, 0
    %v62 = vsel %vm45, %v26, 0
    %v65 = vsel %vm45, %v27, 0
    %v68 = vsel %vm45, %v28, 0
    %v71 = vsel %vm45, %v29, 0
    %v74 = vsel %vm45, %v30, 0
    %v77 = vsel %vm45, %v31, 0
    %v80 = vsel %vm45, %v32, 0
    %v83 = vsel %vm45, %v33, 0
    %v86 = vsel %vm45, %v34, 0
    %v89 = vsel %vm45, %v35, 0
    %v92 = vsel %vm45, %v36, 0
    %94 = vmatpush.msra.mxu0 0.0
    %95 = vmatpush.msra.mxu0 0.0
    %96 = vmatpush.msra.mxu0 0.0
    %97 = vmatpush.msra.mxu0 0.0
    %98 = vmatpush.msra.mxu0 0.0
    %99 = vmatpush.msra.mxu0 0.0
    %100 = vmatpush.msra.mxu0 0.0
    %101 = vmatpush.msra.mxu0 0.0
    %102 = vmatpush.msra.mxu0 0.0
    %103 = vmatpush.msra.mxu0 0.0
    %104 = vmatpush.msra.mxu0 0.0
    %105 = vmatpush.msra.mxu0 0.0
    %106 = vmatpush.msra.mxu0 %v40
    %107 = vmatpush.msra.mxu0 %v39
    %108 = vmatpush.msra.mxu0 %v38
    %109 = vmatpush.msra.mxu0 %v37
    %110 = vmatmul.f32.gmra.mxu0 %v47
    %v111 = vpop.f32.mrf.mxu0
    %v112 = vadd.f32 %v43, %v111
    %113 = vmatmul.f32.gmra.mxu0 %v50
    %v114 = vpop.f32.mrf.mxu0
    %v115 = vadd.f32 %v43, %v114
    %116 = vmatmul.f32.gmra.mxu0 %v53
    %v117 = vpop.f32.mrf.mxu0
    %v118 = vadd.f32 %v43, %v117
    %119 = vmatmul.f32.gmra.mxu0 %v56
    %v120 = vpop.f32.mrf.mxu0
    %v121 = vadd.f32 %v43, %v120
    %122 = vmatmul.f32.gmra.mxu0 %v59
    %v123 = vpop.f32.mrf.mxu0
    %v124 = vadd.f32 %v43, %v123
    %125 = vmatmul.f32.gmra.mxu0 %v62
    %v126 = vpop.f32.mrf.mxu0
    %v127 = vadd.f32 %v43, %v126
    %128 = vmatmul.f32.gmra.mxu0 %v65
    %v129 = vpop.f32.mrf.mxu0
    %v130 = vadd.f32 %v43, %v129
    %131 = vmatmul.f32.gmra.mxu0 %v68
    %v132 = vpop.f32.mrf.mxu0
    %v133 = vadd.f32 %v43, %v132
    %134 = vmatmul.f32.gmra.mxu0 %v71
    %v135 = vpop.f32.mrf.mxu0
    %v136 = vadd.f32 %v43, %v135
    %137 = vmatmul.f32.gmra.mxu0 %v74
    %v138 = vpop.f32.mrf.mxu0
    %v139 = vadd.f32 %v43, %v138
    %140 = vmatmul.f32.gmra.mxu0 %v77
    %v141 = vpop.f32.mrf.mxu0
    %v142 = vadd.f32 %v43, %v141
    %143 = vmatmul.f32.gmra.mxu0 %v80
    %v144 = vpop.f32.mrf.mxu0
    %v145 = vadd.f32 %v43, %v144
    %146 = vmatmul.f32.gmra.mxu0 %v83
    %v147 = vpop.f32.mrf.mxu0
    %v148 = vadd.f32 %v43, %v147
    %149 = vmatmul.f32.gmra.mxu0 %v86
    %v150 = vpop.f32.mrf.mxu0
    %v151 = vadd.f32 %v43, %v150
    %152 = vmatmul.f32.gmra.mxu0 %v89
    %v153 = vpop.f32.mrf.mxu0
    %v154 = vadd.f32 %v43, %v153
    %155 = vmatmul.f32.gmra.mxu0 %v92
    %v156 = vpop.f32.mrf.mxu0
    %v157 = vadd.f32 %v43, %v156
    %158 = vdwg.mxu0
    %v159 = vmax.f32 %v112, 0.0
    %v160 = vmax.f32 %v115, 0.0
    %v161 = vmax.f32 %v118, 0.0
    %v162 = vmax.f32 %v121, 0.0
    %v163 = vmax.f32 %v124, 0.0
    %v164 = vmax.f32 %v127, 0.0
    %v165 = vmax.f32 %v130, 0.0
    %v166 = vmax.f32 %v133, 0.0
    %v167 = vmax.f32 %v136, 0.0
    %v168 = vmax.f32 %v139, 0.0
    %v169 = vmax.f32 %v142, 0.0
    %v170 = vmax.f32 %v145, 0.0
    %v171 = vmax.f32 %v148, 0.0
    %v172 = vmax.f32 %v151, 0.0
    %v173 = vmax.f32 %v154, 0.0
    %v174 = vmax.f32 %v157, 0.0
    %v175 = vld [vmem:[%s3] sm:$0xff]
    %v176 = vld [vmem:[%s3 + $0x8] sm:$0xff]
    %v177 = vld [vmem:[%s4] sm:$0x1]
    %v179 = vperm.slane %v177, 0
    %vm181 = vcmask 130048
    %v183 = vsel %vm181, %v159, 0
    %v186 = vsel %vm181, %v160, 0
    %v189 = vsel %vm181, %v161, 0
    %v192 = vsel %vm181, %v162, 0
    %v195 = vsel %vm181, %v163, 0
    %v198 = vsel %vm181, %v164, 0
    %v201 = vsel %vm181, %v165, 0
    %v204 = vsel %vm181, %v166, 0
    %v207 = vsel %vm181, %v167, 0
    %v210 = vsel %vm181, %v168, 0
    %v213 = vsel %vm181, %v169, 0
    %v216 = vsel %vm181, %v170, 0
    %v219 = vsel %vm181, %v171, 0
    %v222 = vsel %vm181, %v172, 0
    %v225 = vsel %vm181, %v173, 0
    %v228 = vsel %vm181, %v174, 0
    %230 = vmatpush.msra.mxu0 0.0
    %231 = vmatpush.msra.mxu0 0.0
    %232 = vmatpush.msra.mxu0 0.0
    %233 = vmatpush.msra.mxu0 0.0
    %234 = vmatpush.msra.mxu0 0.0
    %235 = vmatpush.msra.mxu0 0.0
    %236 = vmatpush.msra.mxu0 0.0
    %237 = vmatpush.msra.mxu0 0.0
    %238 = vmatpush.msra.mxu0 0.0
    %239 = vmatpush.msra.mxu0 0.0
    %240 = vmatpush.msra.mxu0 0.0
    %241 = vmatpush.msra.mxu0 0.0
    %242 = vmatpush.msra.mxu0 0.0
    %243 = vmatpush.msra.mxu0 0.0
    %244 = vmatpush.msra.mxu0 %v176
    %245 = vmatpush.msra.mxu0 %v175
    %246 = vmatmul.f32.gmra.mxu0 %v183
    %v247 = vpop.f32.mrf.mxu0
    %v248 = vadd.f32 %v179, %v247
    %249 = vmatmul.f32.gmra.mxu0 %v186
    %v250 = vpop.f32.mrf.mxu0
    %v251 = vadd.f32 %v179, %v250
    %252 = vmatmul.f32.gmra.mxu0 %v189
    %v253 = vpop.f32.mrf.mxu0
    %v254 = vadd.f32 %v179, %v253
    %255 = vmatmul.f32.gmra.mxu0 %v192
    %v256 = vpop.f32.mrf.mxu0
    %v257 = vadd.f32 %v179, %v256
    %258 = vmatmul.f32.gmra.mxu0 %v195
    %v259 = vpop.f32.mrf.mxu0
    %v260 = vadd.f32 %v179, %v259
    %261 = vmatmul.f32.gmra.mxu0 %v198
    %v262 = vpop.f32.mrf.mxu0
    %v263 = vadd.f32 %v179, %v262
    %264 = vmatmul.f32.gmra.mxu0 %v201
    %v265 = vpop.f32.mrf.mxu0
    %v266 = vadd.f32 %v179, %v265
    %267 = vmatmul.f32.gmra.mxu0 %v204
    %v268 = vpop.f32.mrf.mxu0
    %v269 = vadd.f32 %v179, %v268
    %270 = vmatmul.f32.gmra.mxu0 %v207
    %v271 = vpop.f32.mrf.mxu0
    %v272 = vadd.f32 %v179, %v271
    %273 = vmatmul.f32.gmra.mxu0 %v210
    %v274 = vpop.f32.mrf.mxu0
    %v275 = vadd.f32 %v179, %v274
    %276 = vmatmul.f32.gmra.mxu0 %v213
    %v277 = vpop.f32.mrf.mxu0
    %v278 = vadd.f32 %v179, %v277
    %279 = vmatmul.f32.gmra.mxu0 %v216
    %v280 = vpop.f32.mrf.mxu0
    %v281 = vadd.f32 %v179, %v280
    %282 = vmatmul.f32.gmra.mxu0 %v219
    %v283 = vpop.f32.mrf.mxu0
    %v284 = vadd.f32 %v179, %v283
    %285 = vmatmul.f32.gmra.mxu0 %v222
    %v286 = vpop.f32.mrf.mxu0
    %v287 = vadd.f32 %v179, %v286
    %288 = vmatmul.f32.gmra.mxu0 %v225
    %v289 = vpop.f32.mrf.mxu0
    %v290 = vadd.f32 %v179, %v289
    %291 = vmatmul.f32.gmra.mxu0 %v228
    %v292 = vpop.f32.mrf.mxu0
    %v293 = vadd.f32 %v179, %v292
    %294 = vdwg.mxu0
    %vm295 = vcmask 64512
    %296 = vst.msk [vmem:[#allocation2] sm:$0xff] %vm295, %v248
    %297 = vst.msk [vmem:[#allocation2 + $0x8] sm:$0xff] %vm295, %v251
    %298 = vst.msk [vmem:[#allocation2 + $0x10] sm:$0xff] %vm295, %v254
    %299 = vst.msk [vmem:[#allocation2 + $0x18] sm:$0xff] %vm295, %v257
    %300 = vst.msk [vmem:[#allocation2 + $0x20] sm:$0xff] %vm295, %v260
    %301 = vst.msk [vmem:[#allocation2 + $0x28] sm:$0xff] %vm295, %v263
    %302 = vst.msk [vmem:[#allocation2 + $0x30] sm:$0xff] %vm295, %v266
    %303 = vst.msk [vmem:[#allocation2 + $0x38] sm:$0xff] %vm295, %v269
    %304 = vst.msk [vmem:[#allocation2 + $0x40] sm:$0xff] %vm295, %v272
    %305 = vst.msk [vmem:[#allocation2 + $0x48] sm:$0xff] %vm295, %v275
    %306 = vst.msk [vmem:[#allocation2 + $0x50] sm:$0xff] %vm295, %v278
    %307 = vst.msk [vmem:[#allocation2 + $0x58] sm:$0xff] %vm295, %v281
    %308 = vst.msk [vmem:[#allocation2 + $0x60] sm:$0xff] %vm295, %v284
    %309 = vst.msk [vmem:[#allocation2 + $0x68] sm:$0xff] %vm295, %v287
    %310 = vst.msk [vmem:[#allocation2 + $0x70] sm:$0xff] %vm295, %v290
    %311 = vst.msk [vmem:[#allocation2 + $0x78] sm:$0xff] %vm295, %v293
    // Predicated region
    $region22: #{tpu_custom_call.1} parent=1 // pred_check
      _
    $region23: #{tpu_custom_call.1} parent=1 // pred_check_branch
      %313 = sbr.rel (0) target = $region25
    $region24: #{tpu_custom_call.1} parent=1 // pred_region
      %315 = vsyncadd [#allocation3], 1920
      %s316 = sshll.u32 [#allocation2], 4
      %s317 = int_to_ptr.vmem [resolvable:$true] %s316
      %s318 = sshll.u32 %s5, 4
      %s319 = int_to_ptr.hbm [resolvable:$true] %s318
      %324 = dma.vmem_to_hbm [thread:$0]  %s317, 128, %s319, [#allocation3], 128, 128, 8
    $region25: #{tpu_custom_call.1} parent=1 // pred_fallthru
      _
    // Predicated region
    $region26: #{tpu_custom_call.1} parent=1 // pred_check
      _
    $region27: #{tpu_custom_call.1} parent=1 // pred_check_branch
      %326 = sbr.rel (0) target = $region29
    $region28: #{tpu_custom_call.1} parent=1 // pred_region
      %328 = dma.done [#allocation3], 2048
    $region29: #{tpu_custom_call.1} parent=1 // pred_fallthru
      _
    %329 = vsyncpa [#allocation3], 1

</llo_original>
